<compile_context>
chip_gen: v7x
topology: tpu7x:2x2x1
jax: 0.10.0
libtpu: 0.0.40
codegen_flags: <defaults>
</compile_context>

<pallas_src>
import jax
import jax.numpy as jnp
from jax.experimental import pallas as pl
from jax.experimental.pallas import tpu as pltpu

BN_EPS = 1e-5
TILE_N_CAP = 1024      # row-tile cap: ~per-step overhead amortized; VMEM per
                       # double-buffered bf16 tile is well under limits at these dims.


def _round_up(x, m):
    return (x + m - 1) // m * m


def _mlp_kernel(x_ref, w1_ref, b1_ref, w2_ref, b2_ref, out_ref):
    # Linear(F -> H) + ReLU  (BN already folded into w1/b1); f32 MXU accumulation.
    h = jnp.dot(x_ref[...], w1_ref[...],
                preferred_element_type=jnp.float32) + b1_ref[...]
    h = jnp.maximum(h, 0.0)
    # Dropout (eval) -> identity.
    # Linear(H -> T) + ReLU; cast h back to the stream dtype for the MXU bf16 path.
    o = jnp.dot(h.astype(w2_ref.dtype), w2_ref[...],
                preferred_element_type=jnp.float32) + b2_ref[...]
    out_ref[...] = jnp.maximum(o, 0.0).astype(out_ref.dtype)


def prepare_params(params, compute_dtype=jnp.bfloat16):
    """One-time parameter prep (hoisted out of the per-call path).

    Folds BatchNorm1d (eval) into Linear1 exactly:
        scale = gamma / sqrt(var + eps);  shift = beta - mean * scale
        W1' = scale[:,None] * W1;         b1' = b1 + shift @ W1
    Both the folded (N>1) and raw (N==1, BN skipped) variants are produced so the
    per-call wrapper only picks one based on the batch size.
    Weights are stored in `compute_dtype` (bf16 by default); biases stay f32.
    """
    w1 = params["w1"].astype(jnp.float32)
    b1 = params["b1"].astype(jnp.float32)
    w2 = params["w2"].astype(jnp.float32)
    b2 = params["b2"].astype(jnp.float32)

    scale = params["bn_gamma"] * jax.lax.rsqrt(params["bn_var"] + BN_EPS)   # (F,)
    shift = params["bn_beta"] - params["bn_mean"] * scale                   # (F,)

    return {
        "w1_bn": (scale[:, None] * w1).astype(compute_dtype),   # (F, H)
        "b1_bn": (b1 + shift @ w1)[None, :],                     # (1, H) f32
        "w1_raw": w1.astype(compute_dtype),                      # (F, H)
        "b1_raw": b1[None, :],                                   # (1, H) f32
        "w2": w2.astype(compute_dtype),                          # (H, T)
        "b2": b2[None, :],                                       # (1, T) f32
    }


def molecular_graph_mlp(g_x, prep):
    """g_x: (N, dim_features) (or (N,) -> unsqueeze(dim=1), matching the module).
    prep: output of prepare_params()."""
    if g_x.ndim == 1:
        # torch: data['g_x'].unsqueeze(dim=1)  => (L,) -> (L, 1)
        g_x = g_x[:, None]
    N, F = g_x.shape
    H = prep["w2"].shape[0]
    T = prep["w2"].shape[1]
    assert prep["w1_raw"].shape[0] == F, "dim_features mismatch"

    # BN applies only when the batch has more than one row (module semantics).
    use_bn = N > 1
    w1 = prep["w1_bn"] if use_bn else prep["w1_raw"]
    b1 = prep["b1_bn"] if use_bn else prep["b1_raw"]
    w2 = prep["w2"]
    b2 = prep["b2"]

    compute_dtype = w2.dtype
    # In a fused pipeline this cast fuses into the producer of g_x; streaming x
    # as bf16 halves the dominant HBM read.
    x = g_x.astype(compute_dtype)

    # Row tile: >=2 tiles when N is moderate (both v7x TensorCores get work),
    # capped so the pipeline stays DMA-bound rather than overhead-bound.
    tile_n = max(8, min(TILE_N_CAP, _round_up(pl.cdiv(N, 2), 8)))
    grid = (pl.cdiv(N, tile_n),)   # tail block (if any) is masked on store.

    out = pl.pallas_call(
        _mlp_kernel,
        out_shape=jax.ShapeDtypeStruct((N, T), jnp.float32),
        grid_spec=pl.GridSpec(
            grid=grid,
            in_specs=[
                pl.BlockSpec((tile_n, F), lambda i: (i, 0)),   # x tile streams (unpadded F)
                pl.BlockSpec((F, H), lambda i: (0, 0)),        # W1 resident (full array)
                pl.BlockSpec((1, H), lambda i: (0, 0)),        # b1 resident
                pl.BlockSpec((H, T), lambda i: (0, 0)),        # W2 resident
                pl.BlockSpec((1, T), lambda i: (0, 0)),        # b2 resident
            ],
            out_specs=pl.BlockSpec((tile_n, T), lambda i: (i, 0)),  # unpadded T
        ),
        compiler_params=pltpu.CompilerParams(
            dimension_semantics=("parallel",)),   # independent row tiles (v7x 2 TCs)
    )(x, w1, b1, w2, b2)

    return out


def init_params(key, dim_features, hidden_dim, dim_target):
    ks = jax.random.split(key, 8)
    scale1 = 1.0 / jnp.sqrt(dim_features)
    scale2 = 1.0 / jnp.sqrt(hidden_dim)
    return {
        # BatchNorm1d(dim_features): affine params + running stats (non-trivial).
        "bn_gamma": jax.random.uniform(ks[0], (dim_features,), jnp.float32, 0.5, 1.5),
        "bn_beta": jax.random.normal(ks[1], (dim_features,), jnp.float32) * 0.1,
        "bn_mean": jax.random.normal(ks[2], (dim_features,), jnp.float32) * 0.1,
        "bn_var": jax.random.uniform(ks[3], (dim_features,), jnp.float32, 0.5, 1.5),
        # Linear(dim_features, hidden): stored as (in, out) == W.T
        "w1": jax.random.uniform(ks[4], (dim_features, hidden_dim), jnp.float32,
                                 -scale1, scale1),
        "b1": jax.random.uniform(ks[5], (hidden_dim,), jnp.float32, -scale1, scale1),
        # Linear(hidden, dim_target): stored as (in, out) == W.T
        "w2": jax.random.uniform(ks[6], (hidden_dim, dim_target), jnp.float32,
                                 -scale2, scale2),
        "b2": jax.random.uniform(ks[7], (dim_target,), jnp.float32, -scale2, scale2),
    }


def _reference(g_x, p):
    # Un-folded f32 reference: BN (eval, N>1) -> Linear -> ReLU -> (dropout id) -> Linear -> ReLU.
    y = g_x
    if g_x.shape[0] > 1:
        y = (g_x - p["bn_mean"]) / jnp.sqrt(p["bn_var"] + BN_EPS) * p["bn_gamma"] + p["bn_beta"]
    h = jnp.maximum(y @ p["w1"] + p["b1"], 0.0)
    return jnp.maximum(h @ p["w2"] + p["b2"], 0.0)


if __name__ == "__main__":
    # Small shapes implied by the module: g_x is (num_graphs, dim_features).
    # N=20 deliberately exercises a 2-tile grid with a masked tail block.
    N, DIM_FEATURES, HIDDEN, DIM_TARGET = 20, 32, 64, 8

    key = jax.random.PRNGKey(0)
    k_x, k_p = jax.random.split(key)
    g_x = jax.random.normal(k_x, (N, DIM_FEATURES), jnp.float32)
    params = init_params(k_p, DIM_FEATURES, HIDDEN, DIM_TARGET)

    ref = _reference(g_x, params)
    mlp = jax.jit(molecular_graph_mlp)

    # 1) Semantics check: f32 streams, tight tolerance (only BN-fold re-association).
    prep_f32 = prepare_params(params, compute_dtype=jnp.float32)
    out_f32 = jax.block_until_ready(mlp(g_x, prep_f32))
    assert out_f32.shape == (N, DIM_TARGET)
    assert jnp.allclose(out_f32, ref, atol=1e-3, rtol=1e-3), "f32 path mismatch vs reference"

    # 2) Performance path: bf16 streams, f32 MXU accumulation (bf16-level tolerance).
    prep_bf16 = prepare_params(params)  # default bf16
    out_bf16 = jax.block_until_ready(mlp(g_x, prep_bf16))
    assert out_bf16.shape == (N, DIM_TARGET)
    assert jnp.allclose(out_bf16, ref, atol=1e-1, rtol=1e-1), "bf16 path mismatch vs reference"

    print("KERNEL_OK")
</pallas_src>

<mosaic_0001>
module attributes {stable_mosaic.version = 11 : i64} {
  func.func @_mlp_kernel(%arg0: i32, %arg1: memref<16x32xf32, #tpu.memory_space<vmem>>, %arg2: memref<32x64xf32, #tpu.memory_space<vmem>>, %arg3: memref<1x64xf32, #tpu.memory_space<vmem>>, %arg4: memref<64x8xf32, #tpu.memory_space<vmem>>, %arg5: memref<1x8xf32, #tpu.memory_space<vmem>>, %arg6: memref<16x8xf32, #tpu.memory_space<vmem>>) attributes {dimension_semantics = [#tpu.dimension_semantics<parallel>], iteration_bounds = array<i64: 2>, scalar_prefetch = 0 : i64, scratch_operands = 0 : i64, tpu.core_type = #tpu.core_type<tc>, window_params = [{transform_indices = @transform_0, window_bounds = array<i64: 16, 32>}, {pipeline_mode = #tpu.pipeline_mode<synchronous>, transform_indices = @transform_1, window_bounds = array<i64: 32, 64>}, {pipeline_mode = #tpu.pipeline_mode<synchronous>, transform_indices = @transform_2, window_bounds = array<i64: 1, 64>}, {pipeline_mode = #tpu.pipeline_mode<synchronous>, transform_indices = @transform_3, window_bounds = array<i64: 64, 8>}, {pipeline_mode = #tpu.pipeline_mode<synchronous>, transform_indices = @transform_4, window_bounds = array<i64: 1, 8>}, {transform_indices = @transform_5, window_bounds = array<i64: 16, 8>}]} {
    %c0 = arith.constant 0 : index
    %c0_0 = arith.constant 0 : index
    %0 = vector.load %arg1[%c0, %c0_0] : memref<16x32xf32, #tpu.memory_space<vmem>>, vector<16x32xf32>
    %c0_1 = arith.constant 0 : index
    %c0_2 = arith.constant 0 : index
    %1 = vector.load %arg2[%c0_1, %c0_2] : memref<32x64xf32, #tpu.memory_space<vmem>>, vector<32x64xf32>
    %cst = arith.constant dense<0.000000e+00> : vector<16x64xf32>
    %2 = tpu.matmul %0, %1, %cst {dimension_numbers = #tpu.dot_dimension_numbers<[1], [0], [0], [1], [0, 0, 1, 1], [], []>} : vector<16x32xf32>, vector<32x64xf32>, vector<16x64xf32> -> vector<16x64xf32>
    %c0_3 = arith.constant 0 : index
    %c0_4 = arith.constant 0 : index
    %3 = vector.load %arg3[%c0_3, %c0_4] : memref<1x64xf32, #tpu.memory_space<vmem>>, vector<1x64xf32>
    %4 = vector.broadcast %3 : vector<1x64xf32> to vector<16x64xf32>
    %5 = arith.addf %2, %4 : vector<16x64xf32>
    %cst_5 = arith.constant 0.000000e+00 : f32
    %6 = vector.broadcast %cst_5 : f32 to vector<16x64xf32>
    %7 = arith.maximumf %5, %6 : vector<16x64xf32>
    %c0_6 = arith.constant 0 : index
    %c0_7 = arith.constant 0 : index
    %8 = vector.load %arg4[%c0_6, %c0_7] : memref<64x8xf32, #tpu.memory_space<vmem>>, vector<64x8xf32>
    %cst_8 = arith.constant dense<0.000000e+00> : vector<16x8xf32>
    %9 = tpu.matmul %7, %8, %cst_8 {dimension_numbers = #tpu.dot_dimension_numbers<[1], [0], [0], [1], [0, 0, 1, 1], [], []>} : vector<16x64xf32>, vector<64x8xf32>, vector<16x8xf32> -> vector<16x8xf32>
    %c0_9 = arith.constant 0 : index
    %c0_10 = arith.constant 0 : index
    %10 = vector.load %arg5[%c0_9, %c0_10] : memref<1x8xf32, #tpu.memory_space<vmem>>, vector<1x8xf32>
    %11 = vector.broadcast %10 : vector<1x8xf32> to vector<16x8xf32>
    %12 = arith.addf %9, %11 : vector<16x8xf32>
    %cst_11 = arith.constant 0.000000e+00 : f32
    %13 = vector.broadcast %cst_11 : f32 to vector<16x8xf32>
    %14 = arith.maximumf %12, %13 : vector<16x8xf32>
    %c0_12 = arith.constant 0 : index
    %c0_13 = arith.constant 0 : index
    %15 = vector.load %arg6[%c0_12, %c0_13] : memref<16x8xf32, #tpu.memory_space<vmem>>, vector<16x8xf32>
    tpu.vector_store %arg6[%c0_12, %c0_13], %14 {strides = array<i32>} : memref<16x8xf32, #tpu.memory_space<vmem>>, vector<16x8xf32>,
    return
  }
  func.func @transform_0(%arg0: i32) -> (i32, i32) {
    %c0_i32 = arith.constant 0 : i32
    %c0_i32_0 = arith.constant 0 : i32
    return %arg0, %c0_i32 : i32, i32
  }
  func.func @transform_1(%arg0: i32) -> (i32, i32) {
    %c0_i32 = arith.constant 0 : i32
    %c0_i32_0 = arith.constant 0 : i32
    %c0_i32_1 = arith.constant 0 : i32
    return %c0_i32, %c0_i32_0 : i32, i32
  }
  func.func @transform_2(%arg0: i32) -> (i32, i32) {
    %c0_i32 = arith.constant 0 : i32
    %c0_i32_0 = arith.constant 0 : i32
    %c0_i32_1 = arith.constant 0 : i32
    return %c0_i32, %c0_i32_0 : i32, i32
  }
  func.func @transform_3(%arg0: i32) -> (i32, i32) {
    %c0_i32 = arith.constant 0 : i32
    %c0_i32_0 = arith.constant 0 : i32
    %c0_i32_1 = arith.constant 0 : i32
    return %c0_i32, %c0_i32_0 : i32, i32
  }
  func.func @transform_4(%arg0: i32) -> (i32, i32) {
    %c0_i32 = arith.constant 0 : i32
    %c0_i32_0 = arith.constant 0 : i32
    %c0_i32_1 = arith.constant 0 : i32
    return %c0_i32, %c0_i32_0 : i32, i32
  }
  func.func @transform_5(%arg0: i32) -> (i32, i32) {
    %c0_i32 = arith.constant 0 : i32
    %c0_i32_0 = arith.constant 0 : i32
    return %arg0, %c0_i32 : i32, i32
  }
}

</mosaic_0001>

<llo_original>
// kernel: molecular_graph_mlp.1
$region0: #{molecular_graph_mlp.1}
  #allocation0 [shape = 'u32[]', space=smem, size = 0x4, offset = 0x4, fixed_abs, tag = 'smem constant byte address 0x4 - core index']
  #allocation1 [shape = 'u32[144,128]{1,0:T(1,128)}', space=vmem, size = 0x12000, scoped, tag = 'internal scratch']
  %s0 = inlined_call_operand.vmem [shape: f32[20,32], index: 0, kind: input, shape index: {}]
  %s1 = inlined_call_operand.vmem [shape: f32[32,64], index: 1, kind: input, shape index: {}]
  %s2 = inlined_call_operand.vmem [shape: f32[1,64], index: 2, kind: input, shape index: {}]
  %s3 = inlined_call_operand.vmem [shape: f32[64,8], index: 3, kind: input, shape index: {}]
  %s4 = inlined_call_operand.vmem [shape: f32[1,8], index: 4, kind: input, shape index: {}]
  %s5 = inlined_call_operand.vmem [shape: f32[20,8], index: 5, kind: output, shape index: {}]
  %s6 = sld [smem:[#allocation0]]
  $region101: #{molecular_graph_mlp.1} parent=0
    _
  %s8 = ssub.s32 1, %s6
  %s9 = scalar_select 0, %s8, %s6
  $region1: #{molecular_graph_mlp.1} parent=0
    #allocation2 [shape = 'u8[16384]{0}', space=vmem, size = 0x4000, scoped, tag = 'output window, operand 0']
    loop: start=0, step=1, limit=4
    $region2: #{molecular_graph_mlp.1} parent=1 // loop_pre_header
      _
    $region3: #{molecular_graph_mlp.1} parent=1 // loop_header
      %s11 = sphi 0, %s15
      %p12 = scmp.ge.s32.totalorder %s11, 4
      %s21 = sphi 0, %s23
      %s24 = sphi 0, %s21
      %s25 = sphi 0, %s24
      %s41 = sphi 0, %s25
      %s45 = sphi 0, %s45
      %s47 = sphi 0, %s45
      %s48 = sphi 0, %s47
      %s62 = sphi 0, %s48
      %s66 = sphi 0, %s66
      %s68 = sphi 0, %s66
      %s69 = sphi 0, %s68
      %s83 = sphi 0, %s69
      %s87 = sphi 0, %s87
      %s89 = sphi 0, %s87
      %s90 = sphi 0, %s89
      %s104 = sphi 0, %s90
      %s108 = sphi 0, %s108
      %s110 = sphi 0, %s108
      %s111 = sphi 0, %s110
      %s125 = sphi 0, %s111
      %s131 = sphi 0, %s133
      %s134 = sphi 0, %s131
      %s135 = sphi 0, %s134
      %s151 = sphi 0, %s135
    $region4: #{molecular_graph_mlp.1} parent=1 // loop_header_branch
      %14 = sbr.rel (%p12) target = $region8
    $region5: #{molecular_graph_mlp.1} parent=1 // loop_body
      %s16 = ssub.s32 %s11, 1
      %s17 = ssub.s32 %s11, 2
      %s18 = sadd.s32 %s11, 1
      %s19 = ssub.s32 %s11, %s18
      %p20 = scmp.eq.s32.totalorder %s19, 0
      %s22 = sadd.s32 %s21, 1
      %s23 = scalar_select %p20, %s21, %s22
      %p26 = pneg %p20
      %p27 = scmp.eq.s32.totalorder %s11, 1
      %p28 = por %p26, %p27
      %p29 = scmp.ne.s32.totalorder %s21, %s24
      %p30 = scmp.eq.s32.totalorder %s11, 0
      %p31 = por %p29, %p30
      %p32 = scmp.ne.s32.totalorder %s21, %s24
      %p33 = scmp.eq.s32.totalorder %s16, 1
      %p34 = por %p32, %p33
      %p35 = scmp.ne.s32.totalorder %s24, %s25
      %p36 = scmp.eq.s32.totalorder %s16, 0
      %p37 = por %p35, %p36
      %p38 = scmp.ne.s32.totalorder %s24, %s25
      %p39 = scmp.eq.s32.totalorder %s17, 1
      %p40 = por %p38, %p39
      %p42 = scmp.ne.s32.totalorder %s25, %s41
      %p43 = scmp.eq.s32.totalorder %s17, 0
      %p44 = por %p42, %p43
      %s46 = sadd.s32 %s45, 1
      %p49 = scmp.eq.s32.totalorder %s11, 1
      %p50 = scmp.ne.s32.totalorder %s45, %s47
      %p51 = scmp.eq.s32.totalorder %s11, 0
      %p52 = por %p50, %p51
      %p53 = scmp.ne.s32.totalorder %s45, %s47
      %p54 = scmp.eq.s32.totalorder %s16, 1
      %p55 = por %p53, %p54
      %p56 = scmp.ne.s32.totalorder %s47, %s48
      %p57 = scmp.eq.s32.totalorder %s16, 0
      %p58 = por %p56, %p57
      %p59 = scmp.ne.s32.totalorder %s47, %s48
      %p60 = scmp.eq.s32.totalorder %s17, 1
      %p61 = por %p59, %p60
      %p63 = scmp.ne.s32.totalorder %s48, %s62
      %p64 = scmp.eq.s32.totalorder %s17, 0
      %p65 = por %p63, %p64
      %s67 = sadd.s32 %s66, 1
      %p70 = scmp.eq.s32.totalorder %s11, 1
      %p71 = scmp.ne.s32.totalorder %s66, %s68
      %p72 = scmp.eq.s32.totalorder %s11, 0
      %p73 = por %p71, %p72
      %p74 = scmp.ne.s32.totalorder %s66, %s68
      %p75 = scmp.eq.s32.totalorder %s16, 1
      %p76 = por %p74, %p75
      %p77 = scmp.ne.s32.totalorder %s68, %s69
      %p78 = scmp.eq.s32.totalorder %s16, 0
      %p79 = por %p77, %p78
      %p80 = scmp.ne.s32.totalorder %s68, %s69
      %p81 = scmp.eq.s32.totalorder %s17, 1
      %p82 = por %p80, %p81
      %p84 = scmp.ne.s32.totalorder %s69, %s83
      %p85 = scmp.eq.s32.totalorder %s17, 0
      %p86 = por %p84, %p85
      %s88 = sadd.s32 %s87, 1
      %p91 = scmp.eq.s32.totalorder %s11, 1
      %p92 = scmp.ne.s32.totalorder %s87, %s89
      %p93 = scmp.eq.s32.totalorder %s11, 0
      %p94 = por %p92, %p93
      %p95 = scmp.ne.s32.totalorder %s87, %s89
      %p96 = scmp.eq.s32.totalorder %s16, 1
      %p97 = por %p95, %p96
      %p98 = scmp.ne.s32.totalorder %s89, %s90
      %p99 = scmp.eq.s32.totalorder %s16, 0
      %p100 = por %p98, %p99
      %p101 = scmp.ne.s32.totalorder %s89, %s90
      %p102 = scmp.eq.s32.totalorder %s17, 1
      %p103 = por %p101, %p102
      %p105 = scmp.ne.s32.totalorder %s90, %s104
      %p106 = scmp.eq.s32.totalorder %s17, 0
      %p107 = por %p105, %p106
      %s109 = sadd.s32 %s108, 1
      %p112 = scmp.eq.s32.totalorder %s11, 1
      %p113 = scmp.ne.s32.totalorder %s108, %s110
      %p114 = scmp.eq.s32.totalorder %s11, 0
      %p115 = por %p113, %p114
      %p116 = scmp.ne.s32.totalorder %s108, %s110
      %p117 = scmp.eq.s32.totalorder %s16, 1
      %p118 = por %p116, %p117
      %p119 = scmp.ne.s32.totalorder %s110, %s111
      %p120 = scmp.eq.s32.totalorder %s16, 0
      %p121 = por %p119, %p120
      %p122 = scmp.ne.s32.totalorder %s110, %s111
      %p123 = scmp.eq.s32.totalorder %s17, 1
      %p124 = por %p122, %p123
      %p126 = scmp.ne.s32.totalorder %s111, %s125
      %p127 = scmp.eq.s32.totalorder %s17, 0
      %p128 = por %p126, %p127
      %s129 = ssub.s32 %s11, %s18
      %p130 = scmp.eq.s32.totalorder %s129, 0
      %s132 = sadd.s32 %s131, 1
      %s133 = scalar_select %p130, %s131, %s132
      %p136 = pneg %p130
      %p137 = scmp.eq.s32.totalorder %s11, 1
      %p138 = por %p136, %p137
      %p139 = scmp.ne.s32.totalorder %s131, %s134
      %p140 = scmp.eq.s32.totalorder %s11, 0
      %p141 = por %p139, %p140
      %p142 = scmp.ne.s32.totalorder %s131, %s134
      %p143 = scmp.eq.s32.totalorder %s16, 1
      %p144 = por %p142, %p143
      %p145 = scmp.ne.s32.totalorder %s134, %s135
      %p146 = scmp.eq.s32.totalorder %s16, 0
      %p147 = por %p145, %p146
      %p148 = scmp.ne.s32.totalorder %s134, %s135
      %p149 = scmp.eq.s32.totalorder %s17, 1
      %p150 = por %p148, %p149
      %p152 = scmp.ne.s32.totalorder %s135, %s151
      %p153 = scmp.eq.s32.totalorder %s17, 0
      %p154 = por %p152, %p153
      %p155 = scmp.le.s32.totalorder 1, %s11
      %p156 = scmp.lt.s32.totalorder %s11, 3
      %p157 = pnand %p155, %p156
      %p158 = pneg %p157
      // Predicated region
      $region9: #{molecular_graph_mlp.1} parent=5 // pred_check
        _
      $region10: #{molecular_graph_mlp.1} parent=5 // pred_check_branch
        %160 = sbr.rel (%p157) target = $region12
      $region11: #{molecular_graph_mlp.1} parent=5 // pred_region
        %s161 = ssub.s32 %s11, 1
        // Predicated region
        $region13: #{molecular_graph_mlp.1} parent=11 // pred_check
          %p162 = pneg %p58
        $region14: #{molecular_graph_mlp.1} parent=11 // pred_check_branch
          %164 = sbr.rel (%p162) target = $region16
        $region15: #{molecular_graph_mlp.1} parent=11 // pred_region
          _
        $region16: #{molecular_graph_mlp.1} parent=11 // pred_fallthru
          _
        // Predicated region
        $region17: #{molecular_graph_mlp.1} parent=11 // pred_check
          %p165 = pneg %p79
        $region18: #{molecular_graph_mlp.1} parent=11 // pred_check_branch
          %167 = sbr.rel (%p165) target = $region20
        $region19: #{molecular_graph_mlp.1} parent=11 // pred_region
          _
        $region20: #{molecular_graph_mlp.1} parent=11 // pred_fallthru
          _
        // Predicated region
        $region21: #{molecular_graph_mlp.1} parent=11 // pred_check
          %p168 = pneg %p100
        $region22: #{molecular_graph_mlp.1} parent=11 // pred_check_branch
          %170 = sbr.rel (%p168) target = $region24
        $region23: #{molecular_graph_mlp.1} parent=11 // pred_region
          _
        $region24: #{molecular_graph_mlp.1} parent=11 // pred_fallthru
          _
        // Predicated region
        $region25: #{molecular_graph_mlp.1} parent=11 // pred_check
          %p171 = pneg %p121
        $region26: #{molecular_graph_mlp.1} parent=11 // pred_check_branch
          %173 = sbr.rel (%p171) target = $region28
        $region27: #{molecular_graph_mlp.1} parent=11 // pred_region
          _
        $region28: #{molecular_graph_mlp.1} parent=11 // pred_fallthru
          _
      $region12: #{molecular_graph_mlp.1} parent=5 // pred_fallthru
        _
      %p174 = scmp.lt.s32.totalorder %s11, 2
      // Predicated region
      $region29: #{molecular_graph_mlp.1} parent=5 // pred_check
        %p175 = pneg %p174
      $region30: #{molecular_graph_mlp.1} parent=5 // pred_check_branch
        %177 = sbr.rel (%p175) target = $region32
      $region31: #{molecular_graph_mlp.1} parent=5 // pred_region
        // Predicated region
        $region33: #{molecular_graph_mlp.1} parent=31 // pred_check
          %p178 = pneg %p31
        $region34: #{molecular_graph_mlp.1} parent=31 // pred_check_branch
          %180 = sbr.rel (%p178) target = $region36
        $region35: #{molecular_graph_mlp.1} parent=31 // pred_region
          %s181 = smul.u32 2, %s11
          %s182 = ssub.s32 3, %s181
          %p183 = scmp.lt.s32.totalorder %s182, 2
          %s184 = scalar_select %p183, %s182, 2
          %s185 = smul.u32 128, %s184
          %p186 = scmp.lt.s32.totalorder %s181, 2
          %s187 = scalar_select %p186, %s181, 2
          %s188 = smul.addr %s187, 8
          %s189 = scalar_lea.vmem %s0, %s188
          %s190 = smul.u32 2, %s11
          %s191 = ssub.s32 3, %s190
          %p192 = scmp.lt.s32.totalorder %s191, 2
          %s193 = scalar_select %p192, %s191, 2
          %s194 = smul.u32 128, %s193
        $region36: #{molecular_graph_mlp.1} parent=31 // pred_fallthru
          _
      $region32: #{molecular_graph_mlp.1} parent=5 // pred_fallthru
        _
      %p195 = scmp.le.s32.totalorder 1, %s11
      %p196 = scmp.lt.s32.totalorder %s11, 3
      %p197 = pnand %p195, %p196
      %p198 = pneg %p197
      // Predicated region
      $region37: #{molecular_graph_mlp.1} parent=5 // pred_check
        _
      $region38: #{molecular_graph_mlp.1} parent=5 // pred_check_branch
        %200 = sbr.rel (%p197) target = $region40
      $region39: #{molecular_graph_mlp.1} parent=5 // pred_region
        %s201 = ssub.s32 %s11, 1
        %s202 = smul.u32 2, %s16
        %s203 = ssub.s32 3, %s202
        %p204 = scmp.lt.s32.totalorder %s203, 2
        %s205 = scalar_select %p204, %s203, 2
        %s206 = smul.u32 128, %s205
        %p207 = scmp.lt.s32.totalorder %s202, 2
        %s208 = scalar_select %p207, %s202, 2
        %s209 = smul.addr %s208, 8
        %s210 = scalar_lea.vmem %s0, %s209
        %p211 = pneg %p37
        %p212 = pneg %p34
        %p213 = pneg %p58
        %p214 = pneg %p55
        %p215 = pneg %p79
        %p216 = pneg %p76
        %p217 = pneg %p100
        %p218 = pneg %p97
        %p219 = pneg %p121
        %p220 = pneg %p118
        %p221 = pneg %p147
        %p222 = pneg %p144
        %s223 = sand.u32 %s134, 1
        %s224 = sand.u32 %s134, 1
        %s225 = smul.addr %s224, 16
        %s226 = scalar_lea.vmem [#allocation2], %s225
        %s227 = smul.u32 2, %s16
        %s228 = ssub.s32 3, %s227
        %p229 = scmp.lt.s32.totalorder %s228, 2
        %s230 = scalar_select %p229, %s228, 2
        %s231 = smul.u32 128, %s230
        %p232 = scmp.lt.s32.totalorder %s227, 2
        %s233 = scalar_select %p232, %s227, 2
        %s234 = smul.addr %s233, 8
        %s235 = scalar_lea.vmem %s0, %s234
        %s236 = smul.u32 2, %s16
        %s237 = ssub.s32 3, %s236
        %p238 = scmp.lt.s32.totalorder %s237, 2
        %s239 = scalar_select %p238, %s237, 2
        %s240 = smul.u32 128, %s239
        %s241 = smul.u32 2, %s16
        %s242 = ssub.s32 3, %s241
        %p243 = scmp.lt.s32.totalorder %s242, 2
        %s244 = scalar_select %p243, %s242, 2
        %s245 = smul.u32 128, %s244
        %v246 = vld [vmem:[%s235] sm:$0xff]
        %v247 = vld [vmem:[%s235 + $0x8] sm:$0xff]
        %v248 = vld [vmem:[%s1] sm:$0xff]
        %v249 = vld [vmem:[%s1 + $0x8] sm:$0xff]
        %v250 = vld [vmem:[%s1 + $0x10] sm:$0xff]
        %v251 = vld [vmem:[%s1 + $0x18] sm:$0xff]
        %v252 = vld [vmem:[%s2] sm:$0x1]
        %v254 = vlaneseq
        %v255 = vshrl.u32 %v254, 7
        %v256 = vsub.s32 0, %v255
        %v257 = vrot.slane %v252, %v256
        %vm259 = vcmask 261120
        %v261 = vsel %vm259, %v246, 0
        %v264 = vsel %vm259, %v247, 0
        %266 = vmatprep.subr.mxu0 0.0
        %267 = vmatpush1.msra.mxu0 %v248
        %268 = vmatprep.subr.mxu0 0.0
        %269 = vmatpush1.msra.mxu0 %v249
        %270 = vmatprep.subr.mxu0 0.0
        %271 = vmatpush1.msra.mxu0 %v250
        %272 = vmatprep.subr.mxu0 0.0
        %273 = vmatpush1.msra.mxu0 %v251
        %274 = vmatprep.subr.mxu0 0.0
        %275 = vmatpush1.msra.mxu0 0.0
        %276 = vmatprep.subr.mxu0 0.0
        %277 = vmatpush1.msra.mxu0 0.0
        %278 = vmatprep.subr.mxu0 0.0
        %279 = vmatpush1.msra.mxu0 0.0
        %280 = vmatprep.subr.mxu0 0.0
        %281 = vmatpush1.msra.mxu0 0.0
        %282 = vmatprep.subr.mxu0 0.0
        %283 = vmatpush1.msra.mxu0 0.0
        %284 = vmatprep.subr.mxu0 0.0
        %285 = vmatpush1.msra.mxu0 0.0
        %286 = vmatprep.subr.mxu0 0.0
        %287 = vmatpush1.msra.mxu0 0.0
        %288 = vmatprep.subr.mxu0 0.0
        %289 = vmatpush1.msra.mxu0 0.0
        %290 = vmatprep.subr.mxu0 0.0
        %291 = vmatpush1.msra.mxu0 0.0
        %292 = vmatprep.subr.mxu0 0.0
        %293 = vmatpush1.msra.mxu0 0.0
        %294 = vmatprep.subr.mxu0 0.0
        %295 = vmatpush1.msra.mxu0 0.0
        %296 = vmatprep.subr.mxu0 0.0
        %297 = vmatpush1.msra.mxu0 0.0
        %298 = vmatprep.subr.mxu0 0.0
        %299 = vmatpush1.msra.mxu0 0.0
        %300 = vmatprep.subr.mxu0 0.0
        %301 = vmatpush1.msra.mxu0 0.0
        %302 = vmatprep.subr.mxu0 0.0
        %303 = vmatpush1.msra.mxu0 0.0
        %304 = vmatprep.subr.mxu0 0.0
        %305 = vmatpush1.msra.mxu0 0.0
        %306 = vmatprep.subr.mxu0 0.0
        %307 = vmatpush1.msra.mxu0 0.0
        %308 = vmatprep.subr.mxu0 0.0
        %309 = vmatpush1.msra.mxu0 0.0
        %310 = vmatprep.subr.mxu0 0.0
        %311 = vmatpush1.msra.mxu0 0.0
        %312 = vmatprep.subr.mxu0 0.0
        %313 = vmatpush1.msra.mxu0 0.0
        %314 = vmatprep.subr.mxu0 0.0
        %315 = vmatpush1.msra.mxu0 0.0
        %316 = vmatprep.subr.mxu0 0.0
        %317 = vmatpush1.msra.mxu0 0.0
        %318 = vmatprep.subr.mxu0 0.0
        %319 = vmatpush1.msra.mxu0 0.0
        %320 = vmatprep.subr.mxu0 0.0
        %321 = vmatpush1.msra.mxu0 0.0
        %322 = vmatprep.subr.mxu0 0.0
        %323 = vmatpush1.msra.mxu0 0.0
        %324 = vmatprep.subr.mxu0 0.0
        %325 = vmatpush1.msra.mxu0 0.0
        %326 = vmatprep.subr.mxu0 0.0
        %327 = vmatpush1.msra.mxu0 0.0
        %328 = vmatprep.subr.mxu0 0.0
        %329 = vmatpush1.msra.mxu0 0.0
        %330 = vmatprep.mubr.f32.mxu0 0.0
        %331 = vmatmul.mubr.f32.gmra.mrb[0].mxu0 %v261
        %v332 = vpop.f32.mrb[0].mxu0
        %v333 = vadd.f32 %v257, %v332
        %v334 = vpop.f32.mrb[0].mxu0
        %335 = vmatprep.mubr.f32.mxu0 0.0
        %336 = vmatmul.mubr.f32.gmra.mrb[0].mxu0 %v264
        %v337 = vpop.f32.mrb[0].mxu0
        %v338 = vadd.f32 %v257, %v337
        %v339 = vpop.f32.mrb[0].mxu0
        %340 = vdwg.mxu0
        %v341 = vmax.f32 %v333, 0.0
        %v342 = vmax.f32 %v338, 0.0
        %v343 = vld [vmem:[%s3] sm:$0xff]
        %v344 = vld [vmem:[%s3 + $0x8] sm:$0xff]
        %v345 = vld [vmem:[%s3 + $0x10] sm:$0xff]
        %v346 = vld [vmem:[%s3 + $0x18] sm:$0xff]
        %v347 = vld [vmem:[%s3 + $0x20] sm:$0xff]
        %v348 = vld [vmem:[%s3 + $0x28] sm:$0xff]
        %v349 = vld [vmem:[%s3 + $0x30] sm:$0xff]
        %v350 = vld [vmem:[%s3 + $0x38] sm:$0xff]
        %v351 = vld [vmem:[%s4] sm:$0x1]
        %v353 = vlaneseq
        %v354 = vshrl.u32 %v353, 7
        %v355 = vsub.s32 0, %v354
        %v356 = vrot.slane %v351, %v355
        %vm358 = vcmask 523264
        %v360 = vsel %vm358, %v341, 0
        %v363 = vsel %vm358, %v342, 0
        %365 = vmatprep.subr.mxu0 0.0
        %366 = vmatpush1.msra.mxu0 %v343
        %367 = vmatprep.subr.mxu0 0.0
        %368 = vmatpush1.msra.mxu0 %v344
        %369 = vmatprep.subr.mxu0 0.0
        %370 = vmatpush1.msra.mxu0 %v345
        %371 = vmatprep.subr.mxu0 0.0
        %372 = vmatpush1.msra.mxu0 %v346
        %373 = vmatprep.subr.mxu0 0.0
        %374 = vmatpush1.msra.mxu0 %v347
        %375 = vmatprep.subr.mxu0 0.0
        %376 = vmatpush1.msra.mxu0 %v348
        %377 = vmatprep.subr.mxu0 0.0
        %378 = vmatpush1.msra.mxu0 %v349
        %379 = vmatprep.subr.mxu0 0.0
        %380 = vmatpush1.msra.mxu0 %v350
        %381 = vmatprep.subr.mxu0 0.0
        %382 = vmatpush1.msra.mxu0 0.0
        %383 = vmatprep.subr.mxu0 0.0
        %384 = vmatpush1.msra.mxu0 0.0
        %385 = vmatprep.subr.mxu0 0.0
        %386 = vmatpush1.msra.mxu0 0.0
        %387 = vmatprep.subr.mxu0 0.0
        %388 = vmatpush1.msra.mxu0 0.0
        %389 = vmatprep.subr.mxu0 0.0
        %390 = vmatpush1.msra.mxu0 0.0
        %391 = vmatprep.subr.mxu0 0.0
        %392 = vmatpush1.msra.mxu0 0.0
        %393 = vmatprep.subr.mxu0 0.0
        %394 = vmatpush1.msra.mxu0 0.0
        %395 = vmatprep.subr.mxu0 0.0
        %396 = vmatpush1.msra.mxu0 0.0
        %397 = vmatprep.subr.mxu0 0.0
        %398 = vmatpush1.msra.mxu0 0.0
        %399 = vmatprep.subr.mxu0 0.0
        %400 = vmatpush1.msra.mxu0 0.0
        %401 = vmatprep.subr.mxu0 0.0
        %402 = vmatpush1.msra.mxu0 0.0
        %403 = vmatprep.subr.mxu0 0.0
        %404 = vmatpush1.msra.mxu0 0.0
        %405 = vmatprep.subr.mxu0 0.0
        %406 = vmatpush1.msra.mxu0 0.0
        %407 = vmatprep.subr.mxu0 0.0
        %408 = vmatpush1.msra.mxu0 0.0
        %409 = vmatprep.subr.mxu0 0.0
        %410 = vmatpush1.msra.mxu0 0.0
        %411 = vmatprep.subr.mxu0 0.0
        %412 = vmatpush1.msra.mxu0 0.0
        %413 = vmatprep.subr.mxu0 0.0
        %414 = vmatpush1.msra.mxu0 0.0
        %415 = vmatprep.subr.mxu0 0.0
        %416 = vmatpush1.msra.mxu0 0.0
        %417 = vmatprep.subr.mxu0 0.0
        %418 = vmatpush1.msra.mxu0 0.0
        %419 = vmatprep.subr.mxu0 0.0
        %420 = vmatpush1.msra.mxu0 0.0
        %421 = vmatprep.subr.mxu0 0.0
        %422 = vmatpush1.msra.mxu0 0.0
        %423 = vmatprep.subr.mxu0 0.0
        %424 = vmatpush1.msra.mxu0 0.0
        %425 = vmatprep.subr.mxu0 0.0
        %426 = vmatpush1.msra.mxu0 0.0
        %427 = vmatprep.subr.mxu0 0.0
        %428 = vmatpush1.msra.mxu0 0.0
        %429 = vmatprep.mubr.f32.mxu0 0.0
        %430 = vmatmul.mubr.f32.gmra.mrb[0].mxu0 %v360
        %v431 = vpop.f32.mrb[0].mxu0
        %v432 = vadd.f32 %v356, %v431
        %v433 = vpop.f32.mrb[0].mxu0
        %434 = vmatprep.mubr.f32.mxu0 0.0
        %435 = vmatmul.mubr.f32.gmra.mrb[0].mxu0 %v363
        %v436 = vpop.f32.mrb[0].mxu0
        %v437 = vadd.f32 %v356, %v436
        %v438 = vpop.f32.mrb[0].mxu0
        %439 = vdwg.mxu0
        %v440 = vmax.f32 %v432, 0.0
        %v441 = vmax.f32 %v437, 0.0
        %vm442 = vcmask 64512
        %443 = vst.msk [vmem:[%s226] sm:$0xff] %vm442, %v440
        %444 = vst.msk [vmem:[%s226 + $0x8] sm:$0xff] %vm442, %v441
        %s445 = sand.u32 %s134, 1
        %s446 = sand.u32 %s134, 1
        %s447 = smul.addr %s446, 16
        %s448 = scalar_lea.vmem [#allocation2], %s447
        // Predicated region
        $region41: #{molecular_graph_mlp.1} parent=39 // pred_check
          %p449 = pneg %p144
        $region42: #{molecular_graph_mlp.1} parent=39 // pred_check_branch
          %451 = sbr.rel (%p449) target = $region44
        $region43: #{molecular_graph_mlp.1} parent=39 // pred_region
          %s452 = smul.u32 2, %s16
          %s453 = ssub.s32 3, %s452
          %p454 = scmp.lt.s32.totalorder %s453, 2
          %s455 = scalar_select %p454, %s453, 2
          %s456 = smul.u32 128, %s455
          %p457 = scmp.ne.s32.totalorder 0, %s456
          %s458 = smul.addr %s452, 8
          %s459 = scalar_lea.vmem %s5, %s458
          // Predicated region
          $region45: #{molecular_graph_mlp.1} parent=43 // pred_check
            %p460 = pneg %p457
          $region46: #{molecular_graph_mlp.1} parent=43 // pred_check_branch
            %462 = sbr.rel (%p460) target = $region48
          $region47: #{molecular_graph_mlp.1} parent=43 // pred_region
            // Predicated region
            $region49: #{molecular_graph_mlp.1} parent=47 // pred_check
              _
            $region50: #{molecular_graph_mlp.1} parent=47 // pred_check_branch
              %464 = sbr.rel (0) target = $region52
            $region51: #{molecular_graph_mlp.1} parent=47 // pred_region
              // Predicated region
              $region71: #{molecular_graph_mlp.1} parent=51 // pred_check
                _
              $region72: #{molecular_graph_mlp.1} parent=51 // pred_check_branch
                %515 = sbr.rel (0) target = $region74
              $region73: #{molecular_graph_mlp.1} parent=51 // pred_region
                %s516 = sshrl.u32 %s455, 1
                // While loop
                $region75: #{molecular_graph_mlp.1} parent=73 // loop_pre_header
                  _
                $region76: #{molecular_graph_mlp.1} parent=73 // loop_header
                  %s518 = sphi 0, %s520
                  %p519 = scmp.ge.s32.totalorder %s518, %s516
                  %s523 = sphi 0, %s532
                  %s524 = sphi %s448, %s535
                  %s525 = sphi %s459, %s536
                $region77: #{molecular_graph_mlp.1} parent=73 // loop_header_branch
                  %522 = sbr.rel (%p519) target = $region81
                $region78: #{molecular_graph_mlp.1} parent=73 // loop_body
                  %v526 = vld [vmem:[%s524] sm:$0xff]
                  %527 = vst [vmem:[%s525] sm:$0xff] %v526
                  %v528 = vld [vmem:[%s524 + $0x8] sm:$0xff]
                  %529 = vst [vmem:[%s525 + $0x8] sm:$0xff] %v528
                  %s530 = sadd.s32 1, %s523
                  %p531 = scmp.ge.s32.totalorder %s530, %s516
                  %s532 = scalar_select %p531, 0, %s530
                  %s533 = smul.u32 %s532, 16
                  %s534 = smul.u32 %s532, 16
                  %s535 = scalar_lea.vmem %s448, %s533 [#allocation2]
                  %s536 = scalar_lea.vmem %s459, %s534
                $region79: #{molecular_graph_mlp.1} parent=73 // loop_footer
                  %s520 = sadd.s32 %s518, 1
                $region80: #{molecular_graph_mlp.1} parent=73 // loop_footer_branch
                  %517 = sbr.rel target = $region76
                $region81: #{molecular_graph_mlp.1} parent=73 // loop_exit
                  _
                %s537 = sshrl.u32 %s455, 1
                %s538 = sand.u32 %s455, 1
                %s539 = smul.u32 %s537, 2
                %s540 = smul.u32 8, %s539
                %s541 = scalar_lea.vmem %s448, %s540 [#allocation2]
                %s542 = smul.u32 8, %s539
                %s543 = scalar_lea.vmem %s459, %s542
                // While loop
                $region82: #{molecular_graph_mlp.1} parent=73 // loop_pre_header
                  _
                $region83: #{molecular_graph_mlp.1} parent=73 // loop_header
                  %s545 = sphi 0, %s547
                  %p546 = scmp.ge.s32.totalorder %s545, %s538
                  %s550 = sphi 0, %s557
                  %s551 = sphi %s541, %s560
                  %s552 = sphi %s543, %s561
                $region84: #{molecular_graph_mlp.1} parent=73 // loop_header_branch
                  %549 = sbr.rel (%p546) target = $region88
                $region85: #{molecular_graph_mlp.1} parent=73 // loop_body
                  %v553 = vld [vmem:[%s551] sm:$0xff]
                  %554 = vst [vmem:[%s552] sm:$0xff] %v553
                  %s555 = sadd.s32 1, %s550
                  %p556 = scmp.ge.s32.totalorder %s555, %s538
                  %s557 = scalar_select %p556, 0, %s555
                  %s558 = smul.u32 %s557, 8
                  %s559 = smul.u32 %s557, 8
                  %s560 = scalar_lea.vmem %s541, %s558 [#allocation2]
                  %s561 = scalar_lea.vmem %s543, %s559
                $region86: #{molecular_graph_mlp.1} parent=73 // loop_footer
                  %s547 = sadd.s32 %s545, 1
                $region87: #{molecular_graph_mlp.1} parent=73 // loop_footer_branch
                  %544 = sbr.rel target = $region83
                $region88: #{molecular_graph_mlp.1} parent=73 // loop_exit
                  _
              $region74: #{molecular_graph_mlp.1} parent=51 // pred_fallthru
                _
              // Predicated region
              $region89: #{molecular_graph_mlp.1} parent=51 // pred_check
                _
              $region90: #{molecular_graph_mlp.1} parent=51 // pred_check_branch
                %563 = sbr.rel target = $region92
              $region91: #{molecular_graph_mlp.1} parent=51 // pred_region
                _
              $region92: #{molecular_graph_mlp.1} parent=51 // pred_fallthru
                _
            $region52: #{molecular_graph_mlp.1} parent=47 // pred_fallthru
              _
            // Predicated region
            $region53: #{molecular_graph_mlp.1} parent=47 // pred_check
              _
            $region54: #{molecular_graph_mlp.1} parent=47 // pred_check_branch
              %466 = sbr.rel target = $region56
            $region55: #{molecular_graph_mlp.1} parent=47 // pred_region
              %s468 = sshrl.u32 %s455, 1
              // While loop
              $region57: #{molecular_graph_mlp.1} parent=55 // loop_pre_header
                _
              $region58: #{molecular_graph_mlp.1} parent=55 // loop_header
                %s470 = sphi 0, %s472
                %p471 = scmp.ge.s32.totalorder %s470, %s468
                %s475 = sphi 0, %s484
                %s476 = sphi %s448, %s487
                %s477 = sphi %s459, %s488
              $region59: #{molecular_graph_mlp.1} parent=55 // loop_header_branch
                %474 = sbr.rel (%p471) target = $region63
              $region60: #{molecular_graph_mlp.1} parent=55 // loop_body
                %v478 = vld [vmem:[%s476] sm:$0xff]
                %479 = vst [vmem:[%s477] sm:$0xff] %v478
                %v480 = vld [vmem:[%s476 + $0x8] sm:$0xff]
                %481 = vst [vmem:[%s477 + $0x8] sm:$0xff] %v480
                %s482 = sadd.s32 1, %s475
                %p483 = scmp.ge.s32.totalorder %s482, %s468
                %s484 = scalar_select %p483, 0, %s482
                %s485 = smul.u32 %s484, 16
                %s486 = smul.u32 %s484, 16
                %s487 = scalar_lea.vmem %s448, %s485 [#allocation2]
                %s488 = scalar_lea.vmem %s459, %s486
              $region61: #{molecular_graph_mlp.1} parent=55 // loop_footer
                %s472 = sadd.s32 %s470, 1
              $region62: #{molecular_graph_mlp.1} parent=55 // loop_footer_branch
                %469 = sbr.rel target = $region58
              $region63: #{molecular_graph_mlp.1} parent=55 // loop_exit
                _
              %s489 = sshrl.u32 %s455, 1
              %s490 = sand.u32 %s455, 1
              %s491 = smul.u32 %s489, 2
              %s492 = smul.u32 8, %s491
              %s493 = scalar_lea.vmem %s448, %s492 [#allocation2]
              %s494 = smul.u32 8, %s491
              %s495 = scalar_lea.vmem %s459, %s494
              // While loop
              $region64: #{molecular_graph_mlp.1} parent=55 // loop_pre_header
                _
              $region65: #{molecular_graph_mlp.1} parent=55 // loop_header
                %s497 = sphi 0, %s499
                %p498 = scmp.ge.s32.totalorder %s497, %s490
                %s502 = sphi 0, %s509
                %s503 = sphi %s493, %s512
                %s504 = sphi %s495, %s513
              $region66: #{molecular_graph_mlp.1} parent=55 // loop_header_branch
                %501 = sbr.rel (%p498) target = $region70
              $region67: #{molecular_graph_mlp.1} parent=55 // loop_body
                %v505 = vld [vmem:[%s503] sm:$0xff]
                %506 = vst [vmem:[%s504] sm:$0xff] %v505
                %s507 = sadd.s32 1, %s502
                %p508 = scmp.ge.s32.totalorder %s507, %s490
                %s509 = scalar_select %p508, 0, %s507
                %s510 = smul.u32 %s509, 8
                %s511 = smul.u32 %s509, 8
                %s512 = scalar_lea.vmem %s493, %s510 [#allocation2]
                %s513 = scalar_lea.vmem %s495, %s511
              $region68: #{molecular_graph_mlp.1} parent=55 // loop_footer
                %s499 = sadd.s32 %s497, 1
              $region69: #{molecular_graph_mlp.1} parent=55 // loop_footer_branch
                %496 = sbr.rel target = $region65
              $region70: #{molecular_graph_mlp.1} parent=55 // loop_exit
                _
            $region56: #{molecular_graph_mlp.1} parent=47 // pred_fallthru
              _
          $region48: #{molecular_graph_mlp.1} parent=43 // pred_fallthru
            _
          %564 = vnop
        $region44: #{molecular_graph_mlp.1} parent=39 // pred_fallthru
          _
      $region40: #{molecular_graph_mlp.1} parent=5 // pred_fallthru
        _
      %p565 = scmp.le.s32.totalorder 2, %s11
      // Predicated region
      $region93: #{molecular_graph_mlp.1} parent=5 // pred_check
        %p566 = pneg %p565
      $region94: #{molecular_graph_mlp.1} parent=5 // pred_check_branch
        %568 = sbr.rel (%p566) target = $region96
      $region95: #{molecular_graph_mlp.1} parent=5 // pred_region
        %s569 = ssub.s32 %s11, 2
        // Predicated region
        $region97: #{molecular_graph_mlp.1} parent=95 // pred_check
          %p570 = pneg %p150
        $region98: #{molecular_graph_mlp.1} parent=95 // pred_check_branch
          %572 = sbr.rel (%p570) target = $region100
        $region99: #{molecular_graph_mlp.1} parent=95 // pred_region
          %s573 = sand.u32 %s135, 1
          %s574 = sand.u32 %s135, 1
          %s575 = smul.addr %s574, 16
          %s576 = scalar_lea.vmem [#allocation2], %s575
        $region100: #{molecular_graph_mlp.1} parent=95 // pred_fallthru
          _
      $region96: #{molecular_graph_mlp.1} parent=5 // pred_fallthru
        _
    $region6: #{molecular_graph_mlp.1} parent=1 // loop_footer
      %s15 = sadd.s32 1, %s11
    $region7: #{molecular_graph_mlp.1} parent=1 // loop_footer_branch
      %10 = sbr.rel target = $region3
    $region8: #{molecular_graph_mlp.1} parent=1 // loop_exit
      _

</llo_original>
